<compile_context>
chip_gen: v7x
topology: tpu7x:2x2x1
jax: 0.10.0
libtpu: 0.0.40
codegen_flags: <defaults>
</compile_context>

<pallas_src>
import numpy as np
import jax
import jax.numpy as jnp
from jax import lax
from jax.experimental import pallas as pl
from jax.experimental.pallas import tpu as pltpu

_LANES = 128
_EPS_NORM = 1e-15   # matches torch: norm_r = r.norm() + 1e-15
_EPS_SQRT = 1e-12   # guard for rsqrt argument (taken branch is > 0 anyway)


def _learn_pose_kernel(p_ref, out_ref):
    # p_ref / out_ref: (8, 128) f32 tiles, lanes = cameras.
    rx = p_ref[0:1, :]; ry = p_ref[1:2, :]; rz = p_ref[2:3, :]
    tx = p_ref[3:4, :]; ty = p_ref[4:5, :]; tz = p_ref[5:6, :]

    # ---- Exp: so(3) -> SO(3) (Rodrigues), exactly as torch `Exp` ----
    s2 = rx * rx + ry * ry + rz * rz
    n = jnp.sqrt(s2) + _EPS_NORM
    inv_n = 1.0 / n                         # one exact reciprocal
    a = jnp.sin(n) * inv_n
    b = (1.0 - jnp.cos(n)) * (inv_n * inv_n)

    # R = I + a*S + b*(S@S), with S = skew(r), S@S = r r^T - |r|^2 I
    R00 = 1.0 + b * (rx * rx - s2)
    R01 = -a * rz + b * rx * ry
    R02 = a * ry + b * rx * rz
    R10 = a * rz + b * ry * rx
    R11 = 1.0 + b * (ry * ry - s2)
    R12 = -a * rx + b * ry * rz
    R20 = -a * ry + b * rz * rx
    R21 = a * rx + b * rz * ry
    R22 = 1.0 + b * (rz * rz - s2)

    # ---- inverse_SE3: c2w = [R|t] -> T = [R^T | -R^T t] ----
    M00, M01, M02 = R00, R10, R20
    M10, M11, M12 = R01, R11, R21
    M20, M21, M22 = R02, R12, R22
    Tx = -(M00 * tx + M01 * ty + M02 * tz)
    Ty = -(M10 * tx + M11 * ty + M12 * tz)
    Tz = -(M20 * tx + M21 * ty + M22 * tz)

    # ---- rotation matrix (M = R^T) -> quaternion (x, y, z, w) ----
    trace = M00 + M11 + M22
    c0 = trace > 0.0
    c1 = jnp.logical_and(M00 >= M11, M00 >= M22)
    c2 = M11 >= M22

    def sel4(v0, v1, v2, v3):
        return jnp.where(c0, v0, jnp.where(c1, v1, jnp.where(c2, v2, v3)))

    A = M21 - M12
    B = M02 - M20
    C = M10 - M01
    D = M01 + M10
    E = M02 + M20
    F = M12 + M21

    arg = sel4(trace + 1.0,
               1.0 + M00 - M11 - M22,
               1.0 + M11 - M00 - M22,
               1.0 + M22 - M00 - M11)
    arg = jnp.maximum(arg, _EPS_SQRT)
    rs = lax.rsqrt(arg)          # single EUP op (exact path, not approx)
    inv_s = 0.5 * rs             # == 1 / (2*sqrt(arg))
    qs = 0.5 * arg * rs          # == 0.25 * (2*sqrt(arg))

    qw = sel4(qs,         A * inv_s, B * inv_s, C * inv_s)
    qx = sel4(A * inv_s,  qs,        D * inv_s, E * inv_s)
    qy = sel4(B * inv_s,  D * inv_s, qs,        F * inv_s)
    qz = sel4(C * inv_s,  E * inv_s, F * inv_s, qs)

    # ---- pack: q in sublanes 0..3, T in sublanes 4..6, zeros in sublane 7 ----
    out_ref[0:1, :] = qx
    out_ref[1:2, :] = qy
    out_ref[2:3, :] = qz
    out_ref[3:4, :] = qw
    out_ref[4:5, :] = Tx
    out_ref[5:6, :] = Ty
    out_ref[6:7, :] = Tz
    out_ref[7:8, :] = jnp.zeros_like(qx)


@jax.jit
def _compute_all_poses(r, t):
    """r, t: (N, 3) f32. Returns (8, N_pad) f32: rows 0-3 = q, rows 4-6 = T."""
    n_cams = r.shape[0]
    n_pad = max(_LANES, ((n_cams + _LANES - 1) // _LANES) * _LANES)

    # Transposed, lane-batched parameter tile: rows 0-2 = r^T, rows 3-5 = t^T.
    p = jnp.zeros((8, n_pad), jnp.float32)
    p = p.at[0:3, :n_cams].set(r.T)
    p = p.at[3:6, :n_cams].set(t.T)

    return pl.pallas_call(
        _learn_pose_kernel,
        out_shape=jax.ShapeDtypeStruct((8, n_pad), jnp.float32),
        grid=(n_pad // _LANES,),
        in_specs=[pl.BlockSpec((8, _LANES), lambda i: (0, i))],
        out_specs=pl.BlockSpec((8, _LANES), lambda i: (0, i)),
        compiler_params=pltpu.CompilerParams(
            dimension_semantics=("parallel",)),   # v7x: split cameras over 2 TCs
    )(p)


@jax.jit
def _learn_pose_forward(r, t, camera_id):
    """r, t: (N, 3) f32 parameters; camera_id: int32 scalar (traced)."""
    n_cams = r.shape[0]
    # Clamp instead of raising (torch would error on OOB indices).
    cam = jnp.clip(camera_id.astype(jnp.int32), 0, n_cams - 1)

    out = _compute_all_poses(r, t)
    col = out[:, cam]                 # (8,) packed pose for this camera
    q = col[0:4]                      # (4,)   quaternion (x, y, z, w)
    t_pc = col[4:7].reshape(1, 3)     # (1, 3) translation (after unsqueeze(0))
    return q, t_pc, r[cam], t[cam]


class LearnPose:
    """JAX/Pallas port of the PyTorch LearnPose module (forward only)."""

    def __init__(self, initial_R, initial_t):
        self.r = jnp.asarray(initial_R, dtype=jnp.float32)   # (N, 3)
        self.t = jnp.asarray(initial_t, dtype=jnp.float32)   # (N, 3)

    def __call__(self, camera_id):
        cam = jnp.asarray(camera_id, dtype=jnp.int32)
        return _learn_pose_forward(self.r, self.t, cam)


def _reference(r_all, t_all, camera_id):
    """Pure numpy reference mirroring the torch forward semantics."""
    r = np.asarray(r_all, np.float32)[camera_id]
    t = np.asarray(t_all, np.float32)[camera_id]
    n = np.sqrt(np.sum(r * r)) + 1e-15
    S = np.array([[0.0, -r[2], r[1]],
                  [r[2], 0.0, -r[0]],
                  [-r[1], r[0], 0.0]], dtype=np.float32)
    R = (np.eye(3, dtype=np.float32)
         + (np.sin(n) / n) * S
         + ((1.0 - np.cos(n)) / (n * n)) * (S @ S))
    M = R.T
    tt = -M @ t
    m00, m01, m02 = M[0]
    m10, m11, m12 = M[1]
    m20, m21, m22 = M[2]
    tr = m00 + m11 + m22
    if tr > 0.0:
        s = 2.0 * np.sqrt(tr + 1.0)
        w = 0.25 * s; x = (m21 - m12) / s; y = (m02 - m20) / s; z = (m10 - m01) / s
    elif m00 >= m11 and m00 >= m22:
        s = 2.0 * np.sqrt(1.0 + m00 - m11 - m22)
        w = (m21 - m12) / s; x = 0.25 * s; y = (m01 + m10) / s; z = (m02 + m20) / s
    elif m11 >= m22:
        s = 2.0 * np.sqrt(1.0 + m11 - m00 - m22)
        w = (m02 - m20) / s; x = (m01 + m10) / s; y = 0.25 * s; z = (m12 + m21) / s
    else:
        s = 2.0 * np.sqrt(1.0 + m22 - m00 - m11)
        w = (m10 - m01) / s; x = (m02 + m20) / s; y = (m12 + m21) / s; z = 0.25 * s
    q = np.array([x, y, z, w], dtype=np.float32)
    return q, tt.reshape(1, 3), r, t


if __name__ == "__main__":
    key = jax.random.PRNGKey(0)
    kr, kt = jax.random.split(key)
    num_cameras = 8
    initial_R = jax.random.normal(kr, (num_cameras, 3), dtype=jnp.float32) * 0.3
    initial_t = jax.random.normal(kt, (num_cameras, 3), dtype=jnp.float32)

    model = LearnPose(initial_R, initial_t)

    R_np = np.array(initial_R)
    t_np = np.array(initial_t)

    for camera_id in (0, 3, num_cameras - 1):
        q, t_pc, r_, t_ = model(camera_id)
        jax.block_until_ready((q, t_pc, r_, t_))

        q_ref, t_pc_ref, r_ref, t_ref = _reference(R_np, t_np, camera_id)
        assert q.shape == (4,) and t_pc.shape == (1, 3)
        assert r_.shape == (3,) and t_.shape == (3,)
        assert np.allclose(np.array(q), q_ref, atol=1e-5)
        assert np.allclose(np.array(t_pc), t_pc_ref, atol=1e-5)
        assert np.allclose(np.array(r_), r_ref, atol=1e-6)
        assert np.allclose(np.array(t_), t_ref, atol=1e-6)

    print("KERNEL_OK")
</pallas_src>

<mosaic_0001>
module attributes {stable_mosaic.version = 11 : i64} {
  func.func @_learn_pose_kernel(%arg0: i32, %arg1: memref<8x128xf32, #tpu.memory_space<vmem>>, %arg2: memref<8x128xf32, #tpu.memory_space<vmem>>) attributes {dimension_semantics = [#tpu.dimension_semantics<parallel>], iteration_bounds = array<i64: 1>, scalar_prefetch = 0 : i64, scratch_operands = 0 : i64, tpu.core_type = #tpu.core_type<tc>, window_params = [{transform_indices = @transform_0, window_bounds = array<i64: 8, 128>}, {transform_indices = @transform_1, window_bounds = array<i64: 8, 128>}]} {
    %c0 = arith.constant 0 : index
    %c0_0 = arith.constant 0 : index
    %0 = vector.load %arg1[%c0, %c0_0] : memref<8x128xf32, #tpu.memory_space<vmem>>, vector<1x128xf32>
    %c1 = arith.constant 1 : index
    %c0_1 = arith.constant 0 : index
    %1 = vector.load %arg1[%c1, %c0_1] : memref<8x128xf32, #tpu.memory_space<vmem>>, vector<1x128xf32>
    %c2 = arith.constant 2 : index
    %c0_2 = arith.constant 0 : index
    %2 = vector.load %arg1[%c2, %c0_2] : memref<8x128xf32, #tpu.memory_space<vmem>>, vector<1x128xf32>
    %c3 = arith.constant 3 : index
    %c0_3 = arith.constant 0 : index
    %3 = vector.load %arg1[%c3, %c0_3] : memref<8x128xf32, #tpu.memory_space<vmem>>, vector<1x128xf32>
    %c4 = arith.constant 4 : index
    %c0_4 = arith.constant 0 : index
    %4 = vector.load %arg1[%c4, %c0_4] : memref<8x128xf32, #tpu.memory_space<vmem>>, vector<1x128xf32>
    %c5 = arith.constant 5 : index
    %c0_5 = arith.constant 0 : index
    %5 = vector.load %arg1[%c5, %c0_5] : memref<8x128xf32, #tpu.memory_space<vmem>>, vector<1x128xf32>
    %6 = arith.mulf %0, %0 : vector<1x128xf32>
    %7 = arith.mulf %1, %1 : vector<1x128xf32>
    %8 = arith.addf %6, %7 : vector<1x128xf32>
    %9 = arith.mulf %2, %2 : vector<1x128xf32>
    %10 = arith.addf %8, %9 : vector<1x128xf32>
    %11 = math.sqrt %10 : vector<1x128xf32>
    %cst = arith.constant 1.000000e-15 : f32
    %12 = vector.broadcast %cst : f32 to vector<1x128xf32>
    %13 = arith.addf %11, %12 : vector<1x128xf32>
    %cst_6 = arith.constant 1.000000e+00 : f32
    %14 = vector.broadcast %cst_6 : f32 to vector<1x128xf32>
    %15 = arith.divf %14, %13 : vector<1x128xf32>
    %16 = math.sin %13 : vector<1x128xf32>
    %17 = arith.mulf %16, %15 : vector<1x128xf32>
    %18 = math.cos %13 : vector<1x128xf32>
    %cst_7 = arith.constant 1.000000e+00 : f32
    %19 = vector.broadcast %cst_7 : f32 to vector<1x128xf32>
    %20 = arith.subf %19, %18 : vector<1x128xf32>
    %21 = arith.mulf %15, %15 : vector<1x128xf32>
    %22 = arith.mulf %20, %21 : vector<1x128xf32>
    %23 = arith.mulf %0, %0 : vector<1x128xf32>
    %24 = arith.subf %23, %10 : vector<1x128xf32>
    %25 = arith.mulf %22, %24 : vector<1x128xf32>
    %cst_8 = arith.constant 1.000000e+00 : f32
    %26 = vector.broadcast %cst_8 : f32 to vector<1x128xf32>
    %27 = arith.addf %26, %25 : vector<1x128xf32>
    %cst_9 = arith.constant 0.000000e+00 : f32
    %28 = vector.broadcast %cst_9 : f32 to vector<1x128xf32>
    %29 = arith.subf %28, %17 : vector<1x128xf32>
    %30 = arith.mulf %29, %2 : vector<1x128xf32>
    %31 = arith.mulf %22, %0 : vector<1x128xf32>
    %32 = arith.mulf %31, %1 : vector<1x128xf32>
    %33 = arith.addf %30, %32 : vector<1x128xf32>
    %34 = arith.mulf %17, %1 : vector<1x128xf32>
    %35 = arith.mulf %22, %0 : vector<1x128xf32>
    %36 = arith.mulf %35, %2 : vector<1x128xf32>
    %37 = arith.addf %34, %36 : vector<1x128xf32>
    %38 = arith.mulf %17, %2 : vector<1x128xf32>
    %39 = arith.mulf %22, %1 : vector<1x128xf32>
    %40 = arith.mulf %39, %0 : vector<1x128xf32>
    %41 = arith.addf %38, %40 : vector<1x128xf32>
    %42 = arith.mulf %1, %1 : vector<1x128xf32>
    %43 = arith.subf %42, %10 : vector<1x128xf32>
    %44 = arith.mulf %22, %43 : vector<1x128xf32>
    %cst_10 = arith.constant 1.000000e+00 : f32
    %45 = vector.broadcast %cst_10 : f32 to vector<1x128xf32>
    %46 = arith.addf %45, %44 : vector<1x128xf32>
    %cst_11 = arith.constant 0.000000e+00 : f32
    %47 = vector.broadcast %cst_11 : f32 to vector<1x128xf32>
    %48 = arith.subf %47, %17 : vector<1x128xf32>
    %49 = arith.mulf %48, %0 : vector<1x128xf32>
    %50 = arith.mulf %22, %1 : vector<1x128xf32>
    %51 = arith.mulf %50, %2 : vector<1x128xf32>
    %52 = arith.addf %49, %51 : vector<1x128xf32>
    %cst_12 = arith.constant 0.000000e+00 : f32
    %53 = vector.broadcast %cst_12 : f32 to vector<1x128xf32>
    %54 = arith.subf %53, %17 : vector<1x128xf32>
    %55 = arith.mulf %54, %1 : vector<1x128xf32>
    %56 = arith.mulf %22, %2 : vector<1x128xf32>
    %57 = arith.mulf %56, %0 : vector<1x128xf32>
    %58 = arith.addf %55, %57 : vector<1x128xf32>
    %59 = arith.mulf %17, %0 : vector<1x128xf32>
    %60 = arith.mulf %22, %2 : vector<1x128xf32>
    %61 = arith.mulf %60, %1 : vector<1x128xf32>
    %62 = arith.addf %59, %61 : vector<1x128xf32>
    %63 = arith.mulf %2, %2 : vector<1x128xf32>
    %64 = arith.subf %63, %10 : vector<1x128xf32>
    %65 = arith.mulf %22, %64 : vector<1x128xf32>
    %cst_13 = arith.constant 1.000000e+00 : f32
    %66 = vector.broadcast %cst_13 : f32 to vector<1x128xf32>
    %67 = arith.addf %66, %65 : vector<1x128xf32>
    %68 = arith.mulf %27, %3 : vector<1x128xf32>
    %69 = arith.mulf %41, %4 : vector<1x128xf32>
    %70 = arith.addf %68, %69 : vector<1x128xf32>
    %71 = arith.mulf %58, %5 : vector<1x128xf32>
    %72 = arith.addf %70, %71 : vector<1x128xf32>
    %cst_14 = arith.constant 0.000000e+00 : f32
    %73 = vector.broadcast %cst_14 : f32 to vector<1x128xf32>
    %74 = arith.subf %73, %72 : vector<1x128xf32>
    %75 = arith.mulf %33, %3 : vector<1x128xf32>
    %76 = arith.mulf %46, %4 : vector<1x128xf32>
    %77 = arith.addf %75, %76 : vector<1x128xf32>
    %78 = arith.mulf %62, %5 : vector<1x128xf32>
    %79 = arith.addf %77, %78 : vector<1x128xf32>
    %cst_15 = arith.constant 0.000000e+00 : f32
    %80 = vector.broadcast %cst_15 : f32 to vector<1x128xf32>
    %81 = arith.subf %80, %79 : vector<1x128xf32>
    %82 = arith.mulf %37, %3 : vector<1x128xf32>
    %83 = arith.mulf %52, %4 : vector<1x128xf32>
    %84 = arith.addf %82, %83 : vector<1x128xf32>
    %85 = arith.mulf %67, %5 : vector<1x128xf32>
    %86 = arith.addf %84, %85 : vector<1x128xf32>
    %cst_16 = arith.constant 0.000000e+00 : f32
    %87 = vector.broadcast %cst_16 : f32 to vector<1x128xf32>
    %88 = arith.subf %87, %86 : vector<1x128xf32>
    %89 = arith.addf %27, %46 : vector<1x128xf32>
    %90 = arith.addf %89, %67 : vector<1x128xf32>
    %cst_17 = arith.constant 0.000000e+00 : f32
    %91 = vector.broadcast %cst_17 : f32 to vector<1x128xf32>
    %92 = arith.cmpf ogt, %90, %91 : vector<1x128xf32>
    %93 = arith.cmpf oge, %27, %46 : vector<1x128xf32>
    %94 = arith.cmpf oge, %27, %67 : vector<1x128xf32>
    %95 = arith.andi %93, %94 : vector<1x128xi1>
    %96 = arith.cmpf oge, %46, %67 : vector<1x128xf32>
    %97 = arith.subf %52, %62 : vector<1x128xf32>
    %98 = arith.subf %58, %37 : vector<1x128xf32>
    %99 = arith.subf %33, %41 : vector<1x128xf32>
    %100 = arith.addf %41, %33 : vector<1x128xf32>
    %101 = arith.addf %58, %37 : vector<1x128xf32>
    %102 = arith.addf %62, %52 : vector<1x128xf32>
    %cst_18 = arith.constant 1.000000e+00 : f32
    %103 = vector.broadcast %cst_18 : f32 to vector<1x128xf32>
    %104 = arith.addf %90, %103 : vector<1x128xf32>
    %cst_19 = arith.constant 1.000000e+00 : f32
    %105 = vector.broadcast %cst_19 : f32 to vector<1x128xf32>
    %106 = arith.addf %105, %27 : vector<1x128xf32>
    %107 = arith.subf %106, %46 : vector<1x128xf32>
    %108 = arith.subf %107, %67 : vector<1x128xf32>
    %cst_20 = arith.constant 1.000000e+00 : f32
    %109 = vector.broadcast %cst_20 : f32 to vector<1x128xf32>
    %110 = arith.addf %109, %46 : vector<1x128xf32>
    %111 = arith.subf %110, %27 : vector<1x128xf32>
    %112 = arith.subf %111, %67 : vector<1x128xf32>
    %cst_21 = arith.constant 1.000000e+00 : f32
    %113 = vector.broadcast %cst_21 : f32 to vector<1x128xf32>
    %114 = arith.addf %113, %67 : vector<1x128xf32>
    %115 = arith.subf %114, %27 : vector<1x128xf32>
    %116 = arith.subf %115, %46 : vector<1x128xf32>
    %117 = arith.select %96, %112, %116 : vector<1x128xi1>, vector<1x128xf32>
    %118 = arith.select %95, %108, %117 : vector<1x128xi1>, vector<1x128xf32>
    %119 = arith.select %92, %104, %118 : vector<1x128xi1>, vector<1x128xf32>
    %cst_22 = arith.constant 9.99999996E-13 : f32
    %120 = vector.broadcast %cst_22 : f32 to vector<1x128xf32>
    %121 = arith.maximumf %119, %120 : vector<1x128xf32>
    %122 = math.rsqrt %121 : vector<1x128xf32>
    %cst_23 = arith.constant 5.000000e-01 : f32
    %123 = vector.broadcast %cst_23 : f32 to vector<1x128xf32>
    %124 = arith.mulf %123, %122 : vector<1x128xf32>
    %cst_24 = arith.constant 5.000000e-01 : f32
    %125 = vector.broadcast %cst_24 : f32 to vector<1x128xf32>
    %126 = arith.mulf %125, %121 : vector<1x128xf32>
    %127 = arith.mulf %126, %122 : vector<1x128xf32>
    %128 = arith.mulf %97, %124 : vector<1x128xf32>
    %129 = arith.mulf %98, %124 : vector<1x128xf32>
    %130 = arith.mulf %99, %124 : vector<1x128xf32>
    %131 = arith.select %96, %129, %130 : vector<1x128xi1>, vector<1x128xf32>
    %132 = arith.select %95, %128, %131 : vector<1x128xi1>, vector<1x128xf32>
    %133 = arith.select %92, %127, %132 : vector<1x128xi1>, vector<1x128xf32>
    %134 = arith.mulf %97, %124 : vector<1x128xf32>
    %135 = arith.mulf %100, %124 : vector<1x128xf32>
    %136 = arith.mulf %101, %124 : vector<1x128xf32>
    %137 = arith.select %96, %135, %136 : vector<1x128xi1>, vector<1x128xf32>
    %138 = arith.select %95, %127, %137 : vector<1x128xi1>, vector<1x128xf32>
    %139 = arith.select %92, %134, %138 : vector<1x128xi1>, vector<1x128xf32>
    %140 = arith.mulf %98, %124 : vector<1x128xf32>
    %141 = arith.mulf %100, %124 : vector<1x128xf32>
    %142 = arith.mulf %102, %124 : vector<1x128xf32>
    %143 = arith.select %96, %127, %142 : vector<1x128xi1>, vector<1x128xf32>
    %144 = arith.select %95, %141, %143 : vector<1x128xi1>, vector<1x128xf32>
    %145 = arith.select %92, %140, %144 : vector<1x128xi1>, vector<1x128xf32>
    %146 = arith.mulf %99, %124 : vector<1x128xf32>
    %147 = arith.mulf %101, %124 : vector<1x128xf32>
    %148 = arith.mulf %102, %124 : vector<1x128xf32>
    %149 = arith.select %96, %148, %127 : vector<1x128xi1>, vector<1x128xf32>
    %150 = arith.select %95, %147, %149 : vector<1x128xi1>, vector<1x128xf32>
    %151 = arith.select %92, %146, %150 : vector<1x128xi1>, vector<1x128xf32>
    %c0_25 = arith.constant 0 : index
    %c0_26 = arith.constant 0 : index
    %152 = vector.load %arg2[%c0_25, %c0_26] : memref<8x128xf32, #tpu.memory_space<vmem>>, vector<1x128xf32>
    tpu.vector_store %arg2[%c0_25, %c0_26], %139 {strides = array<i32>} : memref<8x128xf32, #tpu.memory_space<vmem>>, vector<1x128xf32>,
    %c1_27 = arith.constant 1 : index
    %c0_28 = arith.constant 0 : index
    %153 = vector.load %arg2[%c1_27, %c0_28] : memref<8x128xf32, #tpu.memory_space<vmem>>, vector<1x128xf32>
    tpu.vector_store %arg2[%c1_27, %c0_28], %145 {strides = array<i32>} : memref<8x128xf32, #tpu.memory_space<vmem>>, vector<1x128xf32>,
    %c2_29 = arith.constant 2 : index
    %c0_30 = arith.constant 0 : index
    %154 = vector.load %arg2[%c2_29, %c0_30] : memref<8x128xf32, #tpu.memory_space<vmem>>, vector<1x128xf32>
    tpu.vector_store %arg2[%c2_29, %c0_30], %151 {strides = array<i32>} : memref<8x128xf32, #tpu.memory_space<vmem>>, vector<1x128xf32>,
    %c3_31 = arith.constant 3 : index
    %c0_32 = arith.constant 0 : index
    %155 = vector.load %arg2[%c3_31, %c0_32] : memref<8x128xf32, #tpu.memory_space<vmem>>, vector<1x128xf32>
    tpu.vector_store %arg2[%c3_31, %c0_32], %133 {strides = array<i32>} : memref<8x128xf32, #tpu.memory_space<vmem>>, vector<1x128xf32>,
    %c4_33 = arith.constant 4 : index
    %c0_34 = arith.constant 0 : index
    %156 = vector.load %arg2[%c4_33, %c0_34] : memref<8x128xf32, #tpu.memory_space<vmem>>, vector<1x128xf32>
    tpu.vector_store %arg2[%c4_33, %c0_34], %74 {strides = array<i32>} : memref<8x128xf32, #tpu.memory_space<vmem>>, vector<1x128xf32>,
    %c5_35 = arith.constant 5 : index
    %c0_36 = arith.constant 0 : index
    %157 = vector.load %arg2[%c5_35, %c0_36] : memref<8x128xf32, #tpu.memory_space<vmem>>, vector<1x128xf32>
    tpu.vector_store %arg2[%c5_35, %c0_36], %81 {strides = array<i32>} : memref<8x128xf32, #tpu.memory_space<vmem>>, vector<1x128xf32>,
    %c6 = arith.constant 6 : index
    %c0_37 = arith.constant 0 : index
    %158 = vector.load %arg2[%c6, %c0_37] : memref<8x128xf32, #tpu.memory_space<vmem>>, vector<1x128xf32>
    tpu.vector_store %arg2[%c6, %c0_37], %88 {strides = array<i32>} : memref<8x128xf32, #tpu.memory_space<vmem>>, vector<1x128xf32>,
    %cst_38 = arith.constant 0.000000e+00 : f32
    %159 = vector.broadcast %cst_38 : f32 to vector<1x128xf32>
    %c7 = arith.constant 7 : index
    %c0_39 = arith.constant 0 : index
    %160 = vector.load %arg2[%c7, %c0_39] : memref<8x128xf32, #tpu.memory_space<vmem>>, vector<1x128xf32>
    tpu.vector_store %arg2[%c7, %c0_39], %159 {strides = array<i32>} : memref<8x128xf32, #tpu.memory_space<vmem>>, vector<1x128xf32>,
    return
  }
  func.func @transform_0(%arg0: i32) -> (i32, i32) {
    %c0_i32 = arith.constant 0 : i32
    %c0_i32_0 = arith.constant 0 : i32
    return %c0_i32, %arg0 : i32, i32
  }
  func.func @transform_1(%arg0: i32) -> (i32, i32) {
    %c0_i32 = arith.constant 0 : i32
    %c0_i32_0 = arith.constant 0 : i32
    return %c0_i32, %arg0 : i32, i32
  }
}

</mosaic_0001>

<llo_original>
// kernel: _compute_all_poses.1
$region0: #{_compute_all_poses.1}
  #allocation0 [shape = 'u32[]', space=smem, size = 0x4, offset = 0x4, fixed_abs, tag = 'smem constant byte address 0x4 - core index']
  #allocation1 [shape = 'u32[144,128]{1,0:T(1,128)}', space=vmem, size = 0x12000, scoped, tag = 'internal scratch']
  %s0 = inlined_call_operand.vmem [shape: f32[8,128], index: 0, kind: input, shape index: {}]
  %s1 = inlined_call_operand.hbm [shape: f32[8,128], index: 1, kind: output, shape index: {}]
  %s2 = sld [smem:[#allocation0]]
  $region14: #{_compute_all_poses.1} parent=0
    _
  %s4 = ssub.s32 1, %s2
  %s5 = scalar_select 0, %s4, %s2
  $region1: #{_compute_all_poses.1} parent=0
    #allocation2 [shape = 'u8[4096]{0}', space=vmem, size = 0x1000, scoped, tag = 'output window, operand 0, single buffered']
    #allocation3 [shape = 's32[1]{0}', space=sflag, size = 0x4, scoped, tag = 'scoped memory for _compute_all_poses.1']
    %6 = vsyncpa [#allocation3], 0
    // Predicated region
    $region2: #{_compute_all_poses.1} parent=1 // pred_check
      _
    $region3: #{_compute_all_poses.1} parent=1 // pred_check_branch
      %8 = sbr.rel (0) target = $region5
    $region4: #{_compute_all_poses.1} parent=1 // pred_region
      _
    $region5: #{_compute_all_poses.1} parent=1 // pred_fallthru
      _
    %v9 = vld [vmem:[%s0] sm:$0x1]
    %v10 = vld [vmem:[%s0 + $0x1] sm:$0x1]
    %v11 = vld [vmem:[%s0 + $0x2] sm:$0x1]
    %v12 = vld [vmem:[%s0 + $0x3] sm:$0x1]
    %v13 = vld [vmem:[%s0 + $0x4] sm:$0x1]
    %v14 = vld [vmem:[%s0 + $0x5] sm:$0x1]
    %v15 = vmul.f32 %v9, %v9
    %v16 = vmul.f32 %v10, %v10
    %v17 = vadd.f32 %v15, %v16
    %v18 = vmul.f32 %v11, %v11
    %v19 = vadd.f32 %v17, %v18
    %v20 = vrsqrt.pop %v19
    %v21 = vmul.f32 %v19, %v20
    %vm22 = vcmp.eq.f32.partialorder %v19, inf
    %v23 = vsel %vm22, %v19, %v21
    %vm24 = vcmp.eq.f32.partialorder %v19, 0.0
    %v25 = vand.u32 %v19, 2147483648
    %v26 = vsel %vm24, %v25, %v23
    %v27 = vadd.f32 %v26, 1e-15
    %v28 = vrcp.pop %v27
    %v29 = vmul.f32 1.0, %v28
    %v30 = vand.u32 2147483647, %v27
    %vm31 = vcmp.le.f32.partialorder %v30, 0.7853982
    %vm32 = vcmp.lt.s32.totalorder %v27, 0
    %v33 = vand.u32 %v27, 2139095040
    %v34 = vshrl.u32 %v33, 23
    %v35 = vsub.s32 %v34, 127
    %v36 = vand.u32 2147483647, %v27
    %v37 = vand.u32 %v36, 8388607
    %v38 = vor.u32 %v37, 8388608
    %v39 = vsub.s32 0, %v38
    %v40 = vadd.s32 %v35, 1
    %vm41 = vcmp.gt.s32.totalorder %v40, 0
    %v42 = vsel %vm41, %v40, 0
    %v43 = vshrl.u32 %v42, 5
    %v44 = vand.u32 %v42, 31
    %v45 = vsub.s32 32, %v44
    %v46 = vshrl.u32 683565275, %v45
    %v47 = vshll.u32 683565275, %v44
    %v48 = vshrl.u32 2475754826, %v45
    %v49 = vor.u32 %v47, %v48
    %v50 = vshll.u32 2475754826, %v44
    %v51 = vshrl.u32 2131351028, %v45
    %v52 = vor.u32 %v50, %v51
    %v53 = vshll.u32 2131351028, %v44
    %v54 = vshrl.u32 2102212464, %v45
    %v55 = vor.u32 %v53, %v54
    %v56 = vshll.u32 2102212464, %v44
    %v57 = vshrl.u32 920167782, %v45
    %v58 = vor.u32 %v56, %v57
    %v59 = vshll.u32 920167782, %v44
    %v60 = vshrl.u32 1326507024, %v45
    %v61 = vor.u32 %v59, %v60
    %vm62 = vcmp.lt.s32.totalorder %v43, 1
    %vm63 = vcmp.lt.s32.totalorder %v43, 2
    %vm64 = vcmp.lt.s32.totalorder %v43, 3
    %vm65 = vcmp.lt.s32.totalorder %v43, 4
    %v66 = vsel %vm62, %v46, %v49
    %v67 = vsel %vm65, %v55, 2102212464
    %v68 = vsel %vm64, %v52, %v67
    %v69 = vsel %vm63, %v66, %v68
    %v70 = vsel %vm62, %v49, %v52
    %v71 = vsel %vm65, %v58, 920167782
    %v72 = vsel %vm64, %v55, %v71
    %v73 = vsel %vm63, %v70, %v72
    %v74 = vsel %vm62, %v52, %v55
    %v75 = vsel %vm65, %v61, 1326507024
    %v76 = vsel %vm64, %v58, %v75
    %v77 = vsel %vm63, %v74, %v76
    %v78 = vshll.u32 %v38, 8
    %v79 = vmul.u32.u64.compose %v78, %v77
    %v80 = vextract.low.u32 %v79
    %v81 = vextract.high.u32 %v79
    %v82 = vmul.u32.u64.compose %v78, %v73
    %v83 = vextract.low.u32 %v82
    %v84 = vextract.high.u32 %v82
    %v85 = vmul.u32 %v78, %v69
    %v86 = vadd.s32 %v81, %v83
    %vm87 = vc.u32 %v81, %v83
    %v88 = vadd.s32 %v84, 1
    %v89 = vsel %vm87, %v88, %v84
    %v90 = vadd.s32 %v85, %v89
    %v91 = vadd.s32 %v90, 536870912
    %v92 = vshrl.u32 %v91, 30
    %v93 = vshll.u32 %v92, 30
    %v94 = vsub.s32 %v90, %v93
    %vm95 = vcmp.lt.s32.totalorder %v94, 0
    %v96 = vsub.s32 0, %v94
    %v97 = vsel %vm95, %v96, %v94
    %v98 = vclz %v97
    %v99 = vsub.s32 %v98, 2
    %vm100 = vcmp.gt.s32.totalorder 0, %v99
    %v101 = vsel %vm100, 0, %v99
    %v102 = vsub.s32 32, %v101
    %v103 = vshll.u32 %v94, %v101
    %v104 = vshrl.u32 %v86, %v102
    %v105 = vor.u32 %v103, %v104
    %v106 = vsub.s32 4294967266, %v101
    %v107 = vadd.s32 %v106, 127
    %v108 = vshll.u32 %v107, 23
    %v109 = vor.u32 4788187, %v108
    %v110 = vand.u32 2147483647, %v109
    %v112 = vcvt.s32.f32 %v105
    %v113 = vmul.f32 %v112, %v110
    %v114 = vxor.u32 %v113, 2147483648
    %v115 = vsel %vm32, %v114, %v113
    %v116 = vsub.s32 4, %v92
    %v117 = vsel %vm32, %v116, %v92
    %v118 = vsel %vm31, %v27, %v115
    %v119 = vsel %vm31, 0, %v117
    %v120 = vcosq.f32.pop %v118
    %v121 = vsinq.f32.pop %v118
    %vm122 = vweird.f32 %v27
    %v123 = vadd.s32 %v119, 3
    %v124 = vand.u32 %v123, 3
    %vm125 = vcmp.lt.s32.totalorder %v124, 2
    %vm126 = vcmp.eq.s32.totalorder %v124, 0
    %v127 = vxor.u32 %v121, 2147483648
    %v128 = vsel %vm126, %v120, %v127
    %vm129 = vcmp.eq.s32.totalorder %v124, 2
    %v130 = vxor.u32 %v120, 2147483648
    %v131 = vsel %vm129, %v130, %v121
    %v132 = vsel %vm125, %v128, %v131
    %v133 = vsel %vm122, nan, %v132
    %v134 = vmul.f32 %v133, %v29
    %v135 = vand.u32 2147483647, %v27
    %vm136 = vcmp.le.f32.partialorder %v135, 0.7853982
    %vm137 = vcmp.lt.s32.totalorder %v27, 0
    %v138 = vand.u32 %v27, 2139095040
    %v139 = vshrl.u32 %v138, 23
    %v140 = vsub.s32 %v139, 127
    %v141 = vand.u32 2147483647, %v27
    %v142 = vand.u32 %v141, 8388607
    %v143 = vor.u32 %v142, 8388608
    %v144 = vsub.s32 0, %v143
    %v145 = vadd.s32 %v140, 1
    %vm146 = vcmp.gt.s32.totalorder %v145, 0
    %v147 = vsel %vm146, %v145, 0
    %v148 = vshrl.u32 %v147, 5
    %v149 = vand.u32 %v147, 31
    %v150 = vsub.s32 32, %v149
    %v151 = vshrl.u32 683565275, %v150
    %v152 = vshll.u32 683565275, %v149
    %v153 = vshrl.u32 2475754826, %v150
    %v154 = vor.u32 %v152, %v153
    %v155 = vshll.u32 2475754826, %v149
    %v156 = vshrl.u32 2131351028, %v150
    %v157 = vor.u32 %v155, %v156
    %v158 = vshll.u32 2131351028, %v149
    %v159 = vshrl.u32 2102212464, %v150
    %v160 = vor.u32 %v158, %v159
    %v161 = vshll.u32 2102212464, %v149
    %v162 = vshrl.u32 920167782, %v150
    %v163 = vor.u32 %v161, %v162
    %v164 = vshll.u32 920167782, %v149
    %v165 = vshrl.u32 1326507024, %v150
    %v166 = vor.u32 %v164, %v165
    %vm167 = vcmp.lt.s32.totalorder %v148, 1
    %vm168 = vcmp.lt.s32.totalorder %v148, 2
    %vm169 = vcmp.lt.s32.totalorder %v148, 3
    %vm170 = vcmp.lt.s32.totalorder %v148, 4
    %v171 = vsel %vm167, %v151, %v154
    %v172 = vsel %vm170, %v160, 2102212464
    %v173 = vsel %vm169, %v157, %v172
    %v174 = vsel %vm168, %v171, %v173
    %v175 = vsel %vm167, %v154, %v157
    %v176 = vsel %vm170, %v163, 920167782
    %v177 = vsel %vm169, %v160, %v176
    %v178 = vsel %vm168, %v175, %v177
    %v179 = vsel %vm167, %v157, %v160
    %v180 = vsel %vm170, %v166, 1326507024
    %v181 = vsel %vm169, %v163, %v180
    %v182 = vsel %vm168, %v179, %v181
    %v183 = vshll.u32 %v143, 8
    %v184 = vmul.u32.u64.compose %v183, %v182
    %v185 = vextract.low.u32 %v184
    %v186 = vextract.high.u32 %v184
    %v187 = vmul.u32.u64.compose %v183, %v178
    %v188 = vextract.low.u32 %v187
    %v189 = vextract.high.u32 %v187
    %v190 = vmul.u32 %v183, %v174
    %v191 = vadd.s32 %v186, %v188
    %vm192 = vc.u32 %v186, %v188
    %v193 = vadd.s32 %v189, 1
    %v194 = vsel %vm192, %v193, %v189
    %v195 = vadd.s32 %v190, %v194
    %v196 = vadd.s32 %v195, 536870912
    %v197 = vshrl.u32 %v196, 30
    %v198 = vshll.u32 %v197, 30
    %v199 = vsub.s32 %v195, %v198
    %vm200 = vcmp.lt.s32.totalorder %v199, 0
    %v201 = vsub.s32 0, %v199
    %v202 = vsel %vm200, %v201, %v199
    %v203 = vclz %v202
    %v204 = vsub.s32 %v203, 2
    %vm205 = vcmp.gt.s32.totalorder 0, %v204
    %v206 = vsel %vm205, 0, %v204
    %v207 = vsub.s32 32, %v206
    %v208 = vshll.u32 %v199, %v206
    %v209 = vshrl.u32 %v191, %v207
    %v210 = vor.u32 %v208, %v209
    %v211 = vsub.s32 4294967266, %v206
    %v212 = vadd.s32 %v211, 127
    %v213 = vshll.u32 %v212, 23
    %v214 = vor.u32 4788187, %v213
    %v215 = vand.u32 2147483647, %v214
    %v217 = vcvt.s32.f32 %v210
    %v218 = vmul.f32 %v217, %v215
    %v219 = vxor.u32 %v218, 2147483648
    %v220 = vsel %vm137, %v219, %v218
    %v221 = vsub.s32 4, %v197
    %v222 = vsel %vm137, %v221, %v197
    %v223 = vsel %vm136, %v27, %v220
    %v224 = vsel %vm136, 0, %v222
    %v225 = vcosq.f32.pop %v223
    %v226 = vsinq.f32.pop %v223
    %vm227 = vweird.f32 %v27
    %v228 = vand.u32 %v224, 3
    %vm229 = vcmp.lt.s32.totalorder %v228, 2
    %vm230 = vcmp.eq.s32.totalorder %v228, 0
    %v231 = vxor.u32 %v226, 2147483648
    %v232 = vsel %vm230, %v225, %v231
    %vm233 = vcmp.eq.s32.totalorder %v228, 2
    %v234 = vxor.u32 %v225, 2147483648
    %v235 = vsel %vm233, %v234, %v226
    %v236 = vsel %vm229, %v232, %v235
    %v237 = vsel %vm227, nan, %v236
    %v238 = vsub.f32 1.0, %v237
    %v239 = vmul.f32 %v29, %v29
    %v240 = vmul.f32 %v238, %v239
    %v241 = vsub.f32 %v15, %v19
    %v242 = vmul.f32 %v240, %v241
    %v243 = vadd.f32 %v242, 1.0
    %v244 = vsub.f32 0.0, %v134
    %v245 = vmul.f32 %v244, %v11
    %v246 = vmul.f32 %v240, %v9
    %v247 = vmul.f32 %v246, %v10
    %v248 = vadd.f32 %v245, %v247
    %v249 = vmul.f32 %v134, %v10
    %v250 = vmul.f32 %v246, %v11
    %v251 = vadd.f32 %v249, %v250
    %v252 = vmul.f32 %v134, %v11
    %v253 = vmul.f32 %v240, %v10
    %v254 = vmul.f32 %v253, %v9
    %v255 = vadd.f32 %v252, %v254
    %v256 = vsub.f32 %v16, %v19
    %v257 = vmul.f32 %v240, %v256
    %v258 = vadd.f32 %v257, 1.0
    %v259 = vmul.f32 %v244, %v9
    %v260 = vmul.f32 %v253, %v11
    %v261 = vadd.f32 %v259, %v260
    %v262 = vmul.f32 %v244, %v10
    %v263 = vmul.f32 %v240, %v11
    %v264 = vmul.f32 %v263, %v9
    %v265 = vadd.f32 %v262, %v264
    %v266 = vmul.f32 %v134, %v9
    %v267 = vmul.f32 %v263, %v10
    %v268 = vadd.f32 %v266, %v267
    %v269 = vsub.f32 %v18, %v19
    %v270 = vmul.f32 %v240, %v269
    %v271 = vadd.f32 %v270, 1.0
    %v272 = vmul.f32 %v243, %v12
    %v273 = vmul.f32 %v255, %v13
    %v274 = vadd.f32 %v272, %v273
    %v275 = vmul.f32 %v265, %v14
    %v276 = vadd.f32 %v274, %v275
    %v277 = vsub.f32 0.0, %v276
    %v278 = vmul.f32 %v248, %v12
    %v279 = vmul.f32 %v258, %v13
    %v280 = vadd.f32 %v278, %v279
    %v281 = vmul.f32 %v268, %v14
    %v282 = vadd.f32 %v280, %v281
    %v283 = vsub.f32 0.0, %v282
    %v284 = vmul.f32 %v251, %v12
    %v285 = vmul.f32 %v261, %v13
    %v286 = vadd.f32 %v284, %v285
    %v287 = vmul.f32 %v271, %v14
    %v288 = vadd.f32 %v286, %v287
    %v289 = vsub.f32 0.0, %v288
    %v290 = vadd.f32 %v243, %v258
    %v291 = vadd.f32 %v290, %v271
    %vm292 = vcmp.gt.f32.partialorder %v291, 0.0
    %vm293 = vcmp.ge.f32.partialorder %v243, %v258
    %vm294 = vcmp.ge.f32.partialorder %v243, %v271
    %vm295 = vmand %vm293, %vm294
    %vm296 = vcmp.ge.f32.partialorder %v258, %v271
    %v297 = vsub.f32 %v261, %v268
    %v298 = vsub.f32 %v265, %v251
    %v299 = vsub.f32 %v248, %v255
    %v300 = vadd.f32 %v255, %v248
    %v301 = vadd.f32 %v265, %v251
    %v302 = vadd.f32 %v268, %v261
    %v303 = vadd.f32 %v291, 1.0
    %v304 = vadd.f32 %v243, 1.0
    %v305 = vsub.f32 %v304, %v258
    %v306 = vsub.f32 %v305, %v271
    %v307 = vadd.f32 %v258, 1.0
    %v308 = vsub.f32 %v307, %v243
    %v309 = vsub.f32 %v308, %v271
    %v310 = vadd.f32 %v271, 1.0
    %v311 = vsub.f32 %v310, %v243
    %v312 = vsub.f32 %v311, %v258
    %v313 = vsel %vm296, %v309, %v312
    %v314 = vsel %vm295, %v306, %v313
    %v315 = vsel %vm292, %v303, %v314
    %v316 = vmax.f32 %v315, 1e-12
    %v317 = vrsqrt.pop %v316
    %v318 = vmul.f32 %v317, 0.5
    %v319 = vmul.f32 %v316, 0.5
    %v320 = vmul.f32 %v319, %v317
    %v321 = vmul.f32 %v297, %v318
    %v322 = vmul.f32 %v298, %v318
    %v323 = vmul.f32 %v299, %v318
    %v324 = vsel %vm296, %v322, %v323
    %v325 = vsel %vm295, %v321, %v324
    %v326 = vsel %vm292, %v320, %v325
    %v327 = vmul.f32 %v300, %v318
    %v328 = vmul.f32 %v301, %v318
    %v329 = vsel %vm296, %v327, %v328
    %v330 = vsel %vm295, %v320, %v329
    %v331 = vsel %vm292, %v321, %v330
    %v332 = vmul.f32 %v302, %v318
    %v333 = vsel %vm296, %v320, %v332
    %v334 = vsel %vm295, %v327, %v333
    %v335 = vsel %vm292, %v322, %v334
    %v336 = vsel %vm296, %v332, %v320
    %v337 = vsel %vm295, %v328, %v336
    %v338 = vsel %vm292, %v323, %v337
    %339 = vst [vmem:[#allocation2] sm:$0x1] %v331
    %340 = vst [vmem:[#allocation2 + $0x1] sm:$0x1] %v335
    %341 = vst [vmem:[#allocation2 + $0x2] sm:$0x1] %v338
    %342 = vst [vmem:[#allocation2 + $0x3] sm:$0x1] %v326
    %343 = vst [vmem:[#allocation2 + $0x4] sm:$0x1] %v277
    %344 = vst [vmem:[#allocation2 + $0x5] sm:$0x1] %v283
    %345 = vst [vmem:[#allocation2 + $0x6] sm:$0x1] %v289
    %346 = vst [vmem:[#allocation2 + $0x7] sm:$0x1] 0.0
    // Predicated region
    $region6: #{_compute_all_poses.1} parent=1 // pred_check
      _
    $region7: #{_compute_all_poses.1} parent=1 // pred_check_branch
      %348 = sbr.rel (0) target = $region9
    $region8: #{_compute_all_poses.1} parent=1 // pred_region
      %s350 = ssub.s32 128, 128
      %351 = vsyncadd [#allocation3], %s350
      %s353 = sshll.u32 [#allocation2], 4
      %s354 = int_to_ptr.vmem [resolvable:$true] %s353
      %356 = dma.vmem_to_hbm [thread:$0]  %s354, 128, %s1, [#allocation3]
    $region9: #{_compute_all_poses.1} parent=1 // pred_fallthru
      _
    // Predicated region
    $region10: #{_compute_all_poses.1} parent=1 // pred_check
      _
    $region11: #{_compute_all_poses.1} parent=1 // pred_check_branch
      %358 = sbr.rel (0) target = $region13
    $region12: #{_compute_all_poses.1} parent=1 // pred_region
      %359 = dma.done [#allocation3], 128
    $region13: #{_compute_all_poses.1} parent=1 // pred_fallthru
      _
    %360 = vsyncpa [#allocation3], 1

</llo_original>
